<compile_context>
chip_gen: v5e
topology: v5e:2x2
jax: 0.10.0
libtpu: 0.0.40
codegen_flags: <defaults>
</compile_context>

<pallas_src>
import jax
import jax.numpy as jnp
from jax.experimental import pallas as pl
from jax.experimental.pallas import tpu as pltpu

EPS = 1e-5  # PyTorch BatchNorm1d default eps


def _fused_matvec_kernel(x_ref, v_ref, k_ref, o_ref):
    # Whole affine chain pre-folded in the wrapper: y = x_flat @ V + k (single MXU matvec).
    # Cast to f32 inside the kernel (no-op if x is already f32; halves HBM traffic for bf16 x).
    x = x_ref[...].astype(jnp.float32)
    o_ref[...] = (
        jnp.dot(x, v_ref[...], preferred_element_type=jnp.float32) + k_ref[0, 0]
    )


def _fold_params(params):
    """Fold BN1 -> Linear1 -> BN2 -> Dropout(eval) -> Linear2 into V[C*F, 1], k[1, 1]."""
    rm1, rv1, g1, b1, w1, c1, rm2, rv2, g2, b2, w2, c2 = params
    C, F = rm1.shape
    scale1 = g1 * jax.lax.rsqrt(rv1 + EPS)                        # [C, F]
    a1 = scale1 * w1                                              # [C, F]  x-coefficient of stage 1
    d1 = jnp.sum((b1 - rm1 * scale1) * w1, axis=-1) + c1[0]       # [C]     constant of stage 1
    scale2 = (g2 * jax.lax.rsqrt(rv2 + EPS))[0]                   # [C]
    s2 = scale2 * w2[0]                                           # [C]
    k2 = jnp.sum((b2[0] - rm2[0] * scale2) * w2[0]) + c2[0, 0]    # scalar
    v = (a1 * s2[:, None]).reshape(C * F, 1).astype(jnp.float32)  # [C*F, 1]
    k = (jnp.sum(d1 * s2) + k2).reshape(1, 1).astype(jnp.float32) # [1, 1]
    return v, k


def _pick_batch_block(bs, batch_block):
    """Per-generation batch tile: as large as fits default scoped VMEM, >=2 steps on v7x."""
    if batch_block is not None:
        BB = batch_block
    else:
        kind = ""
        try:
            kind = jax.devices()[0].device_kind.lower()
        except Exception:
            pass
        is_v7 = "v7" in kind
        if "v6" in kind or is_v7:
            # 32 MiB default scoped VMEM: BB=8192 -> ~11.5 MiB x tile, ~23 MiB double-buffered.
            cap = 8192
        else:
            # v5e (16 MiB default scoped) / unknown: BB=4096 -> ~5.75 MiB x tile, ~11.5 MiB dbuf.
            cap = 4096
        BB = bs if bs <= cap else cap
        # v7x has 2 TensorCores per chip; "parallel" only shards if there is >1 grid step.
        if is_v7 and bs > 2048:
            half = 8 * pl.cdiv(pl.cdiv(bs, 2), 8)
            BB = min(BB, half)
    if BB != bs:
        BB = max(8, (BB // 8) * 8)   # sublane rule: output block (BB, 1) needs BB % 8 == 0
    return BB


def double_layer(x, params, *, batch_block=None):
    bs, C, F = x.shape
    CF = C * F
    if jnp.issubdtype(x.dtype, jnp.floating) and x.dtype == jnp.float64:
        x = x.astype(jnp.float32)  # TPU has no f64; unavoidable downcast
    x_flat = x.reshape(bs, CF)                       # lane-dense layout (368 lanes), native dtype
    v, k = _fold_params(params)                      # grid-invariant, precomputed once in the wrapper

    BB = _pick_batch_block(bs, batch_block)

    cost = pl.CostEstimate(
        flops=2 * bs * CF,
        transcendentals=0,
        bytes_accessed=bs * CF * x_flat.dtype.itemsize + CF * 4 + 4 + bs * 4,
    )

    return pl.pallas_call(
        _fused_matvec_kernel,
        grid=(pl.cdiv(bs, BB),),
        in_specs=[
            pl.BlockSpec((BB, CF), lambda i: (i, 0)),                 # x: tiled over batch, contiguous DMA
            pl.BlockSpec((CF, 1), lambda i: (0, 0)),                  # folded weight vector (same block every step)
            pl.BlockSpec(memory_space=pltpu.MemorySpace.SMEM),        # folded scalar bias: SMEM, no VMEM DMA
        ],
        out_specs=pl.BlockSpec((BB, 1), lambda i: (i, 0)),
        out_shape=jax.ShapeDtypeStruct((bs, 1), jnp.float32),
        compiler_params=pltpu.CompilerParams(
            dimension_semantics=("parallel",),        # megacore sharding (matters on v7x, >=2 steps)
        ),
        cost_estimate=cost,
    )(x_flat, v, k)


def double_layer_ref(x, params):
    """Pure-JAX reference with the *unfused* eval-mode math (checks the folding)."""
    rm1, rv1, g1, b1, w1, c1, rm2, rv2, g2, b2, w2, c2 = params
    x = x.astype(jnp.float32)
    xn = (x - rm1[None]) * jax.lax.rsqrt(rv1 + EPS)[None] * g1[None] + b1[None]
    out1 = jnp.sum(xn * w1[None], axis=-1) + c1
    yn = (out1 - rm2) * jax.lax.rsqrt(rv2 + EPS) * g2 + b2
    return jnp.sum(yn * w2, axis=-1, keepdims=True) + c2


def _make_params(key, C, F):
    keys = jax.random.split(key, 12)
    f32 = jnp.float32
    rm1 = jax.random.normal(keys[0], (C, F), dtype=f32) * 0.1
    rv1 = jax.random.uniform(keys[1], (C, F), dtype=f32, minval=0.5, maxval=1.5)
    g1  = 1.0 + 0.1 * jax.random.normal(keys[2], (C, F), dtype=f32)
    b1  = 0.1 * jax.random.normal(keys[3], (C, F), dtype=f32)
    w1  = jax.random.normal(keys[4], (C, F), dtype=f32) / jnp.sqrt(F).astype(f32)   # C x Linear(F,1).weight
    c1  = 0.1 * jax.random.normal(keys[5], (1, C), dtype=f32)                        # C x Linear bias
    rm2 = 0.1 * jax.random.normal(keys[6], (1, C), dtype=f32)
    rv2 = jax.random.uniform(keys[7], (1, C), dtype=f32, minval=0.5, maxval=1.5)
    g2  = 1.0 + 0.1 * jax.random.normal(keys[8], (1, C), dtype=f32)
    b2  = 0.1 * jax.random.normal(keys[9], (1, C), dtype=f32)
    w2  = jax.random.normal(keys[10], (1, C), dtype=f32) / jnp.sqrt(C).astype(f32)   # Linear(C,1).weight
    c2  = 0.1 * jax.random.normal(keys[11], (1, 1), dtype=f32)                        # Linear(C,1).bias
    return (rm1, rv1, g1, b1, w1, c1, rm2, rv2, g2, b2, w2, c2)


if __name__ == "__main__":
    # channels is hard-coded to 23 by the forward pass; BatchNorm1d(window_size) on x[:, i, :]
    # requires window_size == input_size.
    C, F = 23, 16
    key = jax.random.PRNGKey(0)
    kx, kx2, kx3, kp = jax.random.split(key, 4)
    params = _make_params(kp, C, F)

    # 1) Small single-tile check.
    bs = 8
    x = jax.random.normal(kx, (bs, C, F), dtype=jnp.float32)
    y = jax.block_until_ready(double_layer(x, params))
    y_ref = double_layer_ref(x, params)
    assert y.shape == (bs, 1), y.shape
    assert jnp.allclose(y, y_ref, atol=1e-4, rtol=1e-4), "mismatch (single tile)"

    # 2) Multi-step grid check (exercises batch tiling / pipelining path).
    bs2 = 64
    x2 = jax.random.normal(kx2, (bs2, C, F), dtype=jnp.float32)
    y2 = jax.block_until_ready(double_layer(x2, params, batch_block=16))
    y2_ref = double_layer_ref(x2, params)
    assert y2.shape == (bs2, 1), y2.shape
    assert jnp.allclose(y2, y2_ref, atol=1e-4, rtol=1e-4), "mismatch (tiled)"

    # 3) Ragged batch (bs not a multiple of the batch tile -> partial last block).
    bs3 = 40
    x3 = jax.random.normal(kx3, (bs3, C, F), dtype=jnp.float32)
    y3 = jax.block_until_ready(double_layer(x3, params, batch_block=16))
    y3_ref = double_layer_ref(x3, params)
    assert y3.shape == (bs3, 1), y3.shape
    assert jnp.allclose(y3, y3_ref, atol=1e-4, rtol=1e-4), "mismatch (ragged batch)"

    # 4) Native-dtype streaming: bf16 x is cast inside the kernel (half HBM traffic).
    x_bf16 = x2.astype(jnp.bfloat16)
    y4 = jax.block_until_ready(double_layer(x_bf16, params, batch_block=16))
    y4_ref = double_layer_ref(x_bf16.astype(jnp.float32), params)
    assert y4.shape == (bs2, 1), y4.shape
    assert jnp.allclose(y4, y4_ref, atol=1e-3, rtol=1e-3), "mismatch (bf16 input)"

    print("KERNEL_OK")
</pallas_src>

<mosaic_0001>
module attributes {stable_mosaic.version = 11 : i64} {
  func.func @_fused_matvec_kernel(%arg0: i32, %arg1: memref<8x368xf32, #tpu.memory_space<vmem>>, %arg2: memref<368x1xf32, #tpu.memory_space<vmem>>, %arg3: memref<1x1xf32, #tpu.memory_space<smem>>, %arg4: memref<8x1xf32, #tpu.memory_space<vmem>>) attributes {dimension_semantics = [#tpu.dimension_semantics<parallel>], iteration_bounds = array<i64: 1>, scalar_prefetch = 0 : i64, scratch_operands = 0 : i64, tpu.core_type = #tpu.core_type<tc>, window_params = [{transform_indices = @transform_0, window_bounds = array<i64: 8, 368>}, {pipeline_mode = #tpu.pipeline_mode<synchronous>, transform_indices = @transform_1, window_bounds = array<i64: 368, 1>}, {transform_indices = @transform_2, window_bounds = array<i64: 1, 1>}, {transform_indices = @transform_3, window_bounds = array<i64: 8, 1>}]} {
    %c0 = arith.constant 0 : index
    %c0_0 = arith.constant 0 : index
    %0 = vector.load %arg1[%c0, %c0_0] : memref<8x368xf32, #tpu.memory_space<vmem>>, vector<8x368xf32>
    %c0_1 = arith.constant 0 : index
    %c0_2 = arith.constant 0 : index
    %1 = vector.load %arg2[%c0_1, %c0_2] : memref<368x1xf32, #tpu.memory_space<vmem>>, vector<368x1xf32>
    %cst = arith.constant dense<0.000000e+00> : vector<8x1xf32>
    %2 = tpu.matmul %0, %1, %cst {dimension_numbers = #tpu.dot_dimension_numbers<[1], [0], [0], [1], [0, 0, 1, 1], [], []>} : vector<8x368xf32>, vector<368x1xf32>, vector<8x1xf32> -> vector<8x1xf32>
    %c0_3 = arith.constant 0 : index
    %c0_4 = arith.constant 0 : index
    %3 = memref.load %arg3[%c0_3, %c0_4] : memref<1x1xf32, #tpu.memory_space<smem>>
    %4 = vector.broadcast %3 : f32 to vector<8x1xf32>
    %5 = arith.addf %2, %4 : vector<8x1xf32>
    %c0_5 = arith.constant 0 : index
    %c0_6 = arith.constant 0 : index
    %6 = vector.load %arg4[%c0_5, %c0_6] : memref<8x1xf32, #tpu.memory_space<vmem>>, vector<8x1xf32>
    tpu.vector_store %arg4[%c0_5, %c0_6], %5 {strides = array<i32>} : memref<8x1xf32, #tpu.memory_space<vmem>>, vector<8x1xf32>,
    return
  }
  func.func @transform_0(%arg0: i32) -> (i32, i32) {
    %c0_i32 = arith.constant 0 : i32
    %c0_i32_0 = arith.constant 0 : i32
    return %arg0, %c0_i32 : i32, i32
  }
  func.func @transform_1(%arg0: i32) -> (i32, i32) {
    %c0_i32 = arith.constant 0 : i32
    %c0_i32_0 = arith.constant 0 : i32
    %c0_i32_1 = arith.constant 0 : i32
    return %c0_i32, %c0_i32_0 : i32, i32
  }
  func.func @transform_2(%arg0: i32) -> (i32, i32) {
    %c0_i32 = arith.constant 0 : i32
    %c0_i32_0 = arith.constant 0 : i32
    %c0_i32_1 = arith.constant 0 : i32
    return %c0_i32, %c0_i32_0 : i32, i32
  }
  func.func @transform_3(%arg0: i32) -> (i32, i32) {
    %c0_i32 = arith.constant 0 : i32
    %c0_i32_0 = arith.constant 0 : i32
    return %arg0, %c0_i32 : i32, i32
  }
}

</mosaic_0001>

<llo_original>
// kernel: tpu_custom_call.1
$region0: #{tpu_custom_call.1}
  #allocation0 [shape = 'u32[]', space=smem, size = 0x4, offset = 0x4, fixed_abs, tag = 'smem constant byte address 0x4 - core index']
  #allocation1 [shape = 'u32[72,128]{1,0:T(1,128)}', space=vmem, size = 0x9000, scoped, tag = 'internal scratch']
  #allocation2 [shape = 'f32[1,1]{1,0:T(1,128)S(6)}', space=smem, size = 0x200, scoped, tag = 'scoped memory for tpu_custom_call.1']
  %s0 = inlined_call_operand.vmem [shape: f32[8,368], index: 0, kind: input, shape index: {}]
  %s1 = inlined_call_operand.vmem [shape: f32[368,1], index: 1, kind: input, shape index: {}]
  %s2 = inlined_call_operand.<no memory space> [shape: f32[1,1], index: 2, kind: input, shape index: {}]
  %s3 = inlined_call_operand.vmem [shape: f32[8,1], index: 3, kind: output, shape index: {}]
  %s4 = sld [smem:[#allocation0]]
  $region22: #{tpu_custom_call.1} parent=0
    _
  %s6 = ssub.s32 1, %s4
  %s7 = scalar_select 0, %s6, %s4
  %8 = sst [smem:[#allocation2]] %s2
  // Predicated region
  $region2: #{tpu_custom_call.1} parent=0 // pred_check
    _
  $region3: #{tpu_custom_call.1} parent=0 // pred_check_branch
    %10 = sbr.rel (0) target = $region5
  $region4: #{tpu_custom_call.1} parent=0 // pred_region
    _
  $region5: #{tpu_custom_call.1} parent=0 // pred_fallthru
    _
  // Predicated region
  $region6: #{tpu_custom_call.1} parent=0 // pred_check
    _
  $region7: #{tpu_custom_call.1} parent=0 // pred_check_branch
    %12 = sbr.rel (0) target = $region9
  $region8: #{tpu_custom_call.1} parent=0 // pred_region
    _
  $region9: #{tpu_custom_call.1} parent=0 // pred_fallthru
    _
  // Predicated region
  $region10: #{tpu_custom_call.1} parent=0 // pred_check
    _
  $region11: #{tpu_custom_call.1} parent=0 // pred_check_branch
    %14 = sbr.rel (0) target = $region13
  $region12: #{tpu_custom_call.1} parent=0 // pred_region
    _
  $region13: #{tpu_custom_call.1} parent=0 // pred_fallthru
    _
  %v15 = vld [vmem:[%s0] sm:$0xff]
  %v16 = vld [vmem:[%s0 + $0x8] sm:$0xff]
  %v17 = vld [vmem:[%s0 + $0x10] sm:$0xff]
  %v18 = vld [vmem:[%s1] sm:$0xff]
  %v19 = vld [vmem:[%s1 + $0x8] sm:$0xff]
  %v20 = vld [vmem:[%s1 + $0x10] sm:$0xff]
  %v21 = vld [vmem:[%s1 + $0x18] sm:$0xff]
  %v22 = vld [vmem:[%s1 + $0x20] sm:$0xff]
  %v23 = vld [vmem:[%s1 + $0x28] sm:$0xff]
  %v24 = vld [vmem:[%s1 + $0x30] sm:$0xff]
  %v25 = vld [vmem:[%s1 + $0x38] sm:$0xff]
  %v26 = vld [vmem:[%s1 + $0x40] sm:$0xff]
  %v27 = vld [vmem:[%s1 + $0x48] sm:$0xff]
  %v28 = vld [vmem:[%s1 + $0x50] sm:$0xff]
  %v29 = vld [vmem:[%s1 + $0x58] sm:$0xff]
  %v30 = vld [vmem:[%s1 + $0x60] sm:$0xff]
  %v31 = vld [vmem:[%s1 + $0x68] sm:$0xff]
  %v32 = vld [vmem:[%s1 + $0x70] sm:$0xff]
  %v33 = vld [vmem:[%s1 + $0x78] sm:$0xff]
  %v34 = vld [vmem:[%s1 + $0x80] sm:$0xff]
  %v35 = vld [vmem:[%s1 + $0x88] sm:$0xff]
  %v36 = vld [vmem:[%s1 + $0x90] sm:$0xff]
  %v37 = vld [vmem:[%s1 + $0x98] sm:$0xff]
  %v38 = vld [vmem:[%s1 + $0xa0] sm:$0xff]
  %v39 = vld [vmem:[%s1 + $0xa8] sm:$0xff]
  %v40 = vld [vmem:[%s1 + $0xb0] sm:$0xff]
  %v41 = vld [vmem:[%s1 + $0xb8] sm:$0xff]
  %v42 = vld [vmem:[%s1 + $0xc0] sm:$0xff]
  %v43 = vld [vmem:[%s1 + $0xc8] sm:$0xff]
  %v44 = vld [vmem:[%s1 + $0xd0] sm:$0xff]
  %v45 = vld [vmem:[%s1 + $0xd8] sm:$0xff]
  %v46 = vld [vmem:[%s1 + $0xe0] sm:$0xff]
  %v47 = vld [vmem:[%s1 + $0xe8] sm:$0xff]
  %v48 = vld [vmem:[%s1 + $0xf0] sm:$0xff]
  %v49 = vld [vmem:[%s1 + $0xf8] sm:$0xff]
  %v50 = vld [vmem:[%s1 + $0x100] sm:$0xff]
  %v51 = vld [vmem:[%s1 + $0x108] sm:$0xff]
  %v52 = vld [vmem:[%s1 + $0x110] sm:$0xff]
  %v53 = vld [vmem:[%s1 + $0x118] sm:$0xff]
  %v54 = vld [vmem:[%s1 + $0x120] sm:$0xff]
  %v55 = vld [vmem:[%s1 + $0x128] sm:$0xff]
  %v56 = vld [vmem:[%s1 + $0x130] sm:$0xff]
  %v57 = vld [vmem:[%s1 + $0x138] sm:$0xff]
  %v58 = vld [vmem:[%s1 + $0x140] sm:$0xff]
  %v59 = vld [vmem:[%s1 + $0x148] sm:$0xff]
  %v60 = vld [vmem:[%s1 + $0x150] sm:$0xff]
  %v61 = vld [vmem:[%s1 + $0x158] sm:$0xff]
  %v62 = vld [vmem:[%s1 + $0x160] sm:$0xff]
  %v63 = vld [vmem:[%s1 + $0x168] sm:$0xff]
  %s64 = sld [smem:[#allocation2]]
  %v65 = vstv %s64
  %vm66 = vcmask 916480
  %v68 = vsel %vm66, %v17, 0
  %70 = vmatpush.msra.mxu0 %v33
  %71 = vmatpush.msra.mxu0 %v32
  %72 = vmatpush.msra.mxu0 %v31
  %73 = vmatpush.msra.mxu0 %v30
  %74 = vmatpush.msra.mxu0 %v29
  %75 = vmatpush.msra.mxu0 %v28
  %76 = vmatpush.msra.mxu0 %v27
  %77 = vmatpush.msra.mxu0 %v26
  %78 = vmatpush.msra.mxu0 %v25
  %79 = vmatpush.msra.mxu0 %v24
  %80 = vmatpush.msra.mxu0 %v23
  %81 = vmatpush.msra.mxu0 %v22
  %82 = vmatpush.msra.mxu0 %v21
  %83 = vmatpush.msra.mxu0 %v20
  %84 = vmatpush.msra.mxu0 %v19
  %85 = vmatpush.msra.mxu0 %v18
  %86 = vmatmul.f32.gmra.mxu0 %v15
  %v87 = vpop.f32.mrf.mxu0
  %v88 = vadd.f32 %v65, %v87
  %89 = vdwg.mxu0
  %90 = vmatpush.msra.mxu0 %v49
  %91 = vmatpush.msra.mxu0 %v48
  %92 = vmatpush.msra.mxu0 %v47
  %93 = vmatpush.msra.mxu0 %v46
  %94 = vmatpush.msra.mxu0 %v45
  %95 = vmatpush.msra.mxu0 %v44
  %96 = vmatpush.msra.mxu0 %v43
  %97 = vmatpush.msra.mxu0 %v42
  %98 = vmatpush.msra.mxu0 %v41
  %99 = vmatpush.msra.mxu0 %v40
  %100 = vmatpush.msra.mxu0 %v39
  %101 = vmatpush.msra.mxu0 %v38
  %102 = vmatpush.msra.mxu0 %v37
  %103 = vmatpush.msra.mxu0 %v36
  %104 = vmatpush.msra.mxu0 %v35
  %105 = vmatpush.msra.mxu0 %v34
  %106 = vmatmul.f32.gmra.mxu0 %v16
  %v107 = vpop.f32.mrf.mxu0
  %v108 = vadd.f32 %v88, %v107
  %109 = vdwg.mxu0
  %110 = vmatpush.msra.mxu0 0.0
  %111 = vmatpush.msra.mxu0 0.0
  %112 = vmatpush.msra.mxu0 %v63
  %113 = vmatpush.msra.mxu0 %v62
  %114 = vmatpush.msra.mxu0 %v61
  %115 = vmatpush.msra.mxu0 %v60
  %116 = vmatpush.msra.mxu0 %v59
  %117 = vmatpush.msra.mxu0 %v58
  %118 = vmatpush.msra.mxu0 %v57
  %119 = vmatpush.msra.mxu0 %v56
  %120 = vmatpush.msra.mxu0 %v55
  %121 = vmatpush.msra.mxu0 %v54
  %122 = vmatpush.msra.mxu0 %v53
  %123 = vmatpush.msra.mxu0 %v52
  %124 = vmatpush.msra.mxu0 %v51
  %125 = vmatpush.msra.mxu0 %v50
  %126 = vmatmul.f32.gmra.mxu0 %v68
  %v127 = vpop.f32.mrf.mxu0
  %v128 = vadd.f32 %v108, %v127
  %129 = vdwg.mxu0
  %vm130 = vcmask 7168
  %131 = vst.msk [vmem:[%s3] sm:$0xff] %vm130, %v128
  // Predicated region
  $region14: #{tpu_custom_call.1} parent=0 // pred_check
    _
  $region15: #{tpu_custom_call.1} parent=0 // pred_check_branch
    %133 = sbr.rel (0) target = $region17
  $region16: #{tpu_custom_call.1} parent=0 // pred_region
    _
  $region17: #{tpu_custom_call.1} parent=0 // pred_fallthru
    _
  // Predicated region
  $region18: #{tpu_custom_call.1} parent=0 // pred_check
    _
  $region19: #{tpu_custom_call.1} parent=0 // pred_check_branch
    %135 = sbr.rel (0) target = $region21
  $region20: #{tpu_custom_call.1} parent=0 // pred_region
    _
  $region21: #{tpu_custom_call.1} parent=0 // pred_fallthru
    _

</llo_original>
